<compile_context>
chip_gen: v7x
topology: tpu7x:2x2x1
jax: 0.10.0
libtpu: 0.0.40
codegen_flags: <defaults>
</compile_context>

<pallas_src>
import functools

import jax
import jax.numpy as jnp
from jax.experimental import pallas as pl
from jax.experimental.pallas import tpu as pltpu

LEAKY_SLOPE = 0.01  # PyTorch nn.LeakyReLU default


def _round_up(x, m):
    return ((x + m - 1) // m) * m


_VMEM_CAP = None
_SINGLE_BUFFER_WEIGHTS_OK = None  # lazily probed: pl.Buffered(1) support


def _vmem_capacity_bytes():
    """Physical VMEM of the attached TPU (fallback: v7x's 64 MiB per core)."""
    global _VMEM_CAP
    if _VMEM_CAP is None:
        cap = 64 * 1024 * 1024
        try:
            c = int(getattr(pltpu.get_tpu_info(), "vmem_capacity_bytes", 0) or 0)
            if c > 0:
                cap = c
        except Exception:
            pass
        _VMEM_CAP = cap
    return _VMEM_CAP


def _coupling_kernel(*refs, hidden, reverse):
    """refs = (x, w_in, b_in, [w_h0, b_h0, ...], w_out, b_out, y).

    The even/odd split & merge are folded into the weights: w_in has zero rows
    at the x2 lane positions (MLP sees only x1, exactly), and w_out/b_out
    scatter the net to the x2 lane positions with exact zeros at x1 positions,
    so `y = x +/- net_full` is the full coupling update in one pass.
    """
    x_ref, w_in_ref, b_in_ref = refs[:3]
    rest = refs[3:]
    hidden_refs = rest[:2 * hidden]
    w_out_ref, b_out_ref, y_ref = rest[2 * hidden:]

    x = x_ref[...]  # (T, D) f32

    # Input layer: bf16 x bf16 on the MXU with f32 accumulation; bias add and
    # LeakyReLU stay in f32 on the VPU.
    h = jnp.dot(x.astype(jnp.bfloat16), w_in_ref[...],
                preferred_element_type=jnp.float32) + b_in_ref[...]
    h = jnp.maximum(h, LEAKY_SLOPE * h)

    # Hidden stack: static unroll over the TRUE compile-time layer count.
    for i in range(hidden):
        w = hidden_refs[2 * i][...]
        b = hidden_refs[2 * i + 1][...]
        h = jnp.dot(h.astype(w.dtype), w,
                    preferred_element_type=jnp.float32) + b
        h = jnp.maximum(h, LEAKY_SLOPE * h)

    # Output layer scatters net to the x2 lanes; x1 lanes come out exactly 0,
    # so y1 = x1 bit-exact and y2 = x2 +/- net.
    net = jnp.dot(h.astype(w_out_ref.dtype), w_out_ref[...],
                  preferred_element_type=jnp.float32) + b_out_ref[...]
    y_ref[...] = (x - net) if reverse else (x + net)


def _pick_tile_b(batch, dim, mid_p, resident_bytes, vmem_budget):
    """Batch tile: multiple of 16 (bf16 sublane packing), sized so the
    double-buffered x/y streams plus live intermediates fit next to the
    resident weights inside the per-generation VMEM budget, then re-balanced
    so batch padding stays small and large batches get >= 2 grid steps
    (lets v7x's two TensorCores both run on the "parallel" axis)."""
    per_row = (2 * 2 * dim * 4      # x in + y out (f32), double-buffered
               + dim * (2 + 4)      # in-kernel bf16 copy of x + f32 net tile
               + 4 * mid_p * 4)     # ~2 live f32 h buffers + bf16 cast + slack
    avail = max(vmem_budget - resident_bytes - (4 << 20), 16 * per_row)
    tile = min(_round_up(batch, 16), 2048)
    while tile > 16 and tile * per_row > avail:
        tile = _round_up(tile // 2, 16)
    steps = pl.cdiv(batch, tile)
    if steps == 1 and batch >= 32:
        steps = 2
    return max(16, _round_up(pl.cdiv(batch, steps), 16))


def _run_coupling_mlp(x, padded_params, *, hidden, reverse, tile_b,
                      single_buffer_weights, vmem_budget):
    """y = x +/- scatter(MLP(gather(x))) fused, batch-tiled 1-D grid."""
    w_in, b_in, w_hs, b_hs, w_out, b_out = padded_params
    b_pad, dim = x.shape
    mid_p = w_in.shape[1]
    grid = (b_pad // tile_b,)

    def stream_spec():
        return pl.BlockSpec((tile_b, dim), lambda i: (i, 0))

    def resident_spec(a):
        # Full-array block + constant index map -> stays in VMEM across steps.
        if single_buffer_weights:
            # Constant-index blocks never need a second pipeline buffer.
            return pl.BlockSpec(a.shape, lambda i: (0,) * a.ndim,
                                pipeline_mode=pl.Buffered(1))
        return pl.BlockSpec(a.shape, lambda i: (0,) * a.ndim)

    args = [x, w_in, b_in]
    in_specs = [stream_spec(), resident_spec(w_in), resident_spec(b_in)]
    for w, b in zip(w_hs, b_hs):
        args += [w, b]
        in_specs += [resident_spec(w), resident_spec(b)]
    args += [w_out, b_out]
    in_specs += [resident_spec(w_out), resident_spec(b_out)]

    weight_bytes = sum(int(a.size) * a.dtype.itemsize for a in args[1:])
    weight_factor = 1 if single_buffer_weights else 2
    stream_bytes = 2 * 2 * tile_b * dim * 4
    scratch_bytes = tile_b * (dim * 6 + 16 * mid_p)
    vmem_limit = int(min(vmem_budget,
                         max(32 * 1024 * 1024,
                             weight_factor * weight_bytes + stream_bytes
                             + scratch_bytes + (4 << 20))))

    flops = 2 * b_pad * mid_p * (2 * dim + hidden * mid_p)
    bytes_accessed = 2 * b_pad * dim * 4 + weight_bytes
    cost = pl.CostEstimate(flops=flops, transcendentals=0,
                           bytes_accessed=bytes_accessed)

    kernel = functools.partial(_coupling_kernel, hidden=hidden, reverse=reverse)
    return pl.pallas_call(
        kernel,
        out_shape=jax.ShapeDtypeStruct((b_pad, dim), jnp.float32),
        grid=grid,
        in_specs=in_specs,
        out_specs=pl.BlockSpec((tile_b, dim), lambda i: (i, 0)),
        compiler_params=pltpu.CompilerParams(
            dimension_semantics=("parallel",),
            vmem_limit_bytes=vmem_limit),
        cost_estimate=cost,
        input_output_aliases={0: 0},  # y reuses x's (jit-internal) HBM buffer
    )(*args)


@functools.partial(jax.jit, static_argnames=("mask_config", "reverse",
                                              "single_buffer_weights"))
def _forward_impl(x, params, *, mask_config, reverse, single_buffer_weights):
    w_in, b_in, w_hs, b_hs, w_out, b_out = params
    batch, dim = x.shape
    assert dim % 2 == 0, "Cannot split to exact half at odd length"
    half = dim // 2
    mid = w_in.shape[1]
    hidden = len(w_hs)

    mid_p = _round_up(mid, 128)            # lane-align hidden width for the MXU
    off1 = 1 if mask_config == 1 else 0    # x1 lanes (input to the net)
    off2 = 1 - off1                        # x2 lanes (additively transformed)

    # Fold split/merge into the weights (see module docstring).  Matmul
    # operands in bf16, biases f32 for the f32 epilogue.
    w_in_exp = jnp.zeros((dim, mid_p), jnp.float32)
    w_in_exp = w_in_exp.at[off1::2, :mid].set(w_in).astype(jnp.bfloat16)
    b_in_p = jnp.zeros((1, mid_p), jnp.float32).at[:, :mid].set(b_in)
    w_hs_p, b_hs_p = [], []
    for w, b in zip(w_hs, b_hs):
        w_hs_p.append(jnp.zeros((mid_p, mid_p), jnp.float32)
                      .at[:mid, :mid].set(w).astype(jnp.bfloat16))
        b_hs_p.append(jnp.zeros((1, mid_p), jnp.float32).at[:, :mid].set(b))
    w_out_exp = jnp.zeros((mid_p, dim), jnp.float32)
    w_out_exp = w_out_exp.at[:mid, off2::2].set(w_out).astype(jnp.bfloat16)
    b_out_exp = jnp.zeros((1, dim), jnp.float32).at[:, off2::2].set(b_out)
    padded_params = (w_in_exp, b_in_p, tuple(w_hs_p), tuple(b_hs_p),
                     w_out_exp, b_out_exp)

    vmem_cap = _vmem_capacity_bytes()
    vmem_budget = (3 * vmem_cap) // 4      # ~96 MiB on v5e/v6e, ~48 MiB on v7x
    weight_factor = 1 if single_buffer_weights else 2
    resident_bytes = weight_factor * (
        dim * mid_p * 2 + mid_p * 4
        + hidden * (mid_p * mid_p * 2 + mid_p * 4)
        + mid_p * dim * 2 + dim * 4)

    tile_b = _pick_tile_b(batch, dim, mid_p, resident_bytes, vmem_budget)
    b_pad = _round_up(batch, tile_b)
    x_p = jnp.pad(x.astype(jnp.float32), ((0, b_pad - batch), (0, 0)))

    y = _run_coupling_mlp(x_p, padded_params, hidden=hidden, reverse=reverse,
                          tile_b=tile_b,
                          single_buffer_weights=single_buffer_weights,
                          vmem_budget=vmem_budget)
    return y[:batch]


def additive_coupling_forward(x, log_det_J, params, mask_config, reverse=False):
    """Matches AdditiveCoupling.forward semantics (x: [B, D], D even)."""
    global _SINGLE_BUFFER_WEIGHTS_OK
    mask_config = int(mask_config)
    reverse = bool(reverse)
    if _SINGLE_BUFFER_WEIGHTS_OK is None:
        try:
            y = _forward_impl(x, params, mask_config=mask_config,
                              reverse=reverse, single_buffer_weights=True)
            jax.block_until_ready(y)
            _SINGLE_BUFFER_WEIGHTS_OK = True
            return y, log_det_J
        except Exception:
            # pl.Buffered(1) on resident weights not supported by this
            # jax/Mosaic build -- fall back to default double buffering.
            _SINGLE_BUFFER_WEIGHTS_OK = False
    y = _forward_impl(x, params, mask_config=mask_config, reverse=reverse,
                      single_buffer_weights=_SINGLE_BUFFER_WEIGHTS_OK)
    return y, log_det_J


def init_params(key, in_out_dim, mid_dim, hidden):
    """Synthetic init mimicking nn.Linear's U(-1/sqrt(fan_in), 1/sqrt(fan_in)).

    Weights stored as (in, out); hidden layers kept as tuples so hidden == 0
    is represented exactly (no dummy zero layer)."""
    half = in_out_dim // 2
    ks = jax.random.split(key, 2 * (hidden + 2))

    def u(k, shape, fan_in):
        lim = 1.0 / jnp.sqrt(fan_in)
        return jax.random.uniform(k, shape, jnp.float32, -lim, lim)

    w_in = u(ks[0], (half, mid_dim), half)
    b_in = u(ks[1], (1, mid_dim), half)
    w_hs, b_hs = [], []
    for i in range(hidden):
        w_hs.append(u(ks[2 + 2 * i], (mid_dim, mid_dim), mid_dim))
        b_hs.append(u(ks[3 + 2 * i], (1, mid_dim), mid_dim))
    w_out = u(ks[2 + 2 * hidden], (mid_dim, half), mid_dim)
    b_out = u(ks[3 + 2 * hidden], (1, half), mid_dim)
    return (w_in, b_in, tuple(w_hs), tuple(b_hs), w_out, b_out)


def _reference_forward(x, log_det_J, params, mask_config, reverse=False):
    """Pure-JAX reference (same bf16-operand / f32-accumulate math)."""
    w_in, b_in, w_hs, b_hs, w_out, b_out = params
    x = x.astype(jnp.float32)
    if mask_config == 1:
        x1, x2 = x[:, 1::2], x[:, 0::2]
    else:
        x1, x2 = x[:, 0::2], x[:, 1::2]
    h = jnp.dot(x1.astype(jnp.bfloat16), w_in.astype(jnp.bfloat16),
                preferred_element_type=jnp.float32) + b_in
    h = jnp.maximum(h, LEAKY_SLOPE * h)
    for w, b in zip(w_hs, b_hs):
        h = jnp.dot(h.astype(jnp.bfloat16), w.astype(jnp.bfloat16),
                    preferred_element_type=jnp.float32) + b
        h = jnp.maximum(h, LEAKY_SLOPE * h)
    net = jnp.dot(h.astype(jnp.bfloat16), w_out.astype(jnp.bfloat16),
                  preferred_element_type=jnp.float32) + b_out
    y2 = x2 - net if reverse else x2 + net
    y1 = x1
    y = jnp.zeros_like(x)
    if mask_config == 1:
        y = y.at[:, 1::2].set(y1).at[:, 0::2].set(y2)
    else:
        y = y.at[:, 0::2].set(y1).at[:, 1::2].set(y2)
    return y, log_det_J


if __name__ == "__main__":
    B = 2
    in_out_dim = 16   # D (even)
    mid_dim = 32
    hidden = 2
    mask_config = 1

    key = jax.random.PRNGKey(0)
    k_x, k_p, k_p0 = jax.random.split(key, 3)
    x = jax.random.normal(k_x, (B, in_out_dim), jnp.float32)
    log_det_J = jnp.zeros((), jnp.float32)
    params = init_params(k_p, in_out_dim, mid_dim, hidden)

    y, ldj = additive_coupling_forward(x, log_det_J, params, mask_config,
                                       reverse=False)
    y = jax.block_until_ready(y)

    y_ref, _ = _reference_forward(x, log_det_J, params, mask_config,
                                  reverse=False)
    assert jnp.allclose(y, y_ref, atol=1e-3, rtol=1e-3), "mismatch vs reference"

    # invertibility: reverse(forward(x)) == x (net(x1) cancels exactly)
    x_rec, _ = additive_coupling_forward(y, ldj, params, mask_config,
                                         reverse=True)
    x_rec = jax.block_until_ready(x_rec)
    assert jnp.allclose(x_rec, x, atol=1e-5, rtol=1e-5), "inverse mismatch"

    # hidden == 0 path and the other mask_config
    params0 = init_params(k_p0, in_out_dim, mid_dim, 0)
    y0, _ = additive_coupling_forward(x, log_det_J, params0, 0, reverse=False)
    y0 = jax.block_until_ready(y0)
    y0_ref, _ = _reference_forward(x, log_det_J, params0, 0, reverse=False)
    assert jnp.allclose(y0, y0_ref, atol=1e-3, rtol=1e-3), "hidden=0 mismatch"

    print("KERNEL_OK")
</pallas_src>

<mosaic_0001>
module attributes {stable_mosaic.version = 11 : i64} {
  func.func @_coupling_kernel(%arg0: i32, %arg1: memref<16x16xf32, #tpu.memory_space<vmem>>, %arg2: memref<16x128xbf16, #tpu.memory_space<vmem>>, %arg3: memref<1x128xf32, #tpu.memory_space<vmem>>, %arg4: memref<128x128xbf16, #tpu.memory_space<vmem>>, %arg5: memref<1x128xf32, #tpu.memory_space<vmem>>, %arg6: memref<128x128xbf16, #tpu.memory_space<vmem>>, %arg7: memref<1x128xf32, #tpu.memory_space<vmem>>, %arg8: memref<128x16xbf16, #tpu.memory_space<vmem>>, %arg9: memref<1x16xf32, #tpu.memory_space<vmem>>, %arg10: memref<16x16xf32, #tpu.memory_space<vmem>>) attributes {dimension_semantics = [#tpu.dimension_semantics<parallel>], iteration_bounds = array<i64: 1>, scalar_prefetch = 0 : i64, scratch_operands = 0 : i64, tpu.core_type = #tpu.core_type<tc>, window_params = [{transform_indices = @transform_0, window_bounds = array<i64: 16, 16>}, {pipeline_mode = #tpu.pipeline_mode<synchronous>, transform_indices = @transform_1, window_bounds = array<i64: 16, 128>}, {pipeline_mode = #tpu.pipeline_mode<synchronous>, transform_indices = @transform_2, window_bounds = array<i64: 1, 128>}, {pipeline_mode = #tpu.pipeline_mode<synchronous>, transform_indices = @transform_3, window_bounds = array<i64: 128, 128>}, {pipeline_mode = #tpu.pipeline_mode<synchronous>, transform_indices = @transform_4, window_bounds = array<i64: 1, 128>}, {pipeline_mode = #tpu.pipeline_mode<synchronous>, transform_indices = @transform_5, window_bounds = array<i64: 128, 128>}, {pipeline_mode = #tpu.pipeline_mode<synchronous>, transform_indices = @transform_6, window_bounds = array<i64: 1, 128>}, {pipeline_mode = #tpu.pipeline_mode<synchronous>, transform_indices = @transform_7, window_bounds = array<i64: 128, 16>}, {pipeline_mode = #tpu.pipeline_mode<synchronous>, transform_indices = @transform_8, window_bounds = array<i64: 1, 16>}, {transform_indices = @transform_9, window_bounds = array<i64: 16, 16>}]} {
    %c0 = arith.constant 0 : index
    %c0_0 = arith.constant 0 : index
    %0 = vector.load %arg1[%c0, %c0_0] : memref<16x16xf32, #tpu.memory_space<vmem>>, vector<16x16xf32>
    %1 = arith.truncf %0 : vector<16x16xf32> to vector<16x16xbf16>
    %c0_1 = arith.constant 0 : index
    %c0_2 = arith.constant 0 : index
    %2 = vector.load %arg2[%c0_1, %c0_2] : memref<16x128xbf16, #tpu.memory_space<vmem>>, vector<16x128xbf16>
    %cst = arith.constant dense<0.000000e+00> : vector<16x128xf32>
    %3 = tpu.matmul %1, %2, %cst {dimension_numbers = #tpu.dot_dimension_numbers<[1], [0], [0], [1], [0, 0, 1, 1], [], []>} : vector<16x16xbf16>, vector<16x128xbf16>, vector<16x128xf32> -> vector<16x128xf32>
    %c0_3 = arith.constant 0 : index
    %c0_4 = arith.constant 0 : index
    %4 = vector.load %arg3[%c0_3, %c0_4] : memref<1x128xf32, #tpu.memory_space<vmem>>, vector<1x128xf32>
    %5 = vector.broadcast %4 : vector<1x128xf32> to vector<16x128xf32>
    %6 = arith.addf %3, %5 : vector<16x128xf32>
    %cst_5 = arith.constant 0.00999999977 : f32
    %7 = vector.broadcast %cst_5 : f32 to vector<16x128xf32>
    %8 = arith.mulf %7, %6 : vector<16x128xf32>
    %9 = arith.maximumf %6, %8 : vector<16x128xf32>
    %c0_6 = arith.constant 0 : index
    %c0_7 = arith.constant 0 : index
    %10 = vector.load %arg4[%c0_6, %c0_7] : memref<128x128xbf16, #tpu.memory_space<vmem>>, vector<128x128xbf16>
    %c0_8 = arith.constant 0 : index
    %c0_9 = arith.constant 0 : index
    %11 = vector.load %arg5[%c0_8, %c0_9] : memref<1x128xf32, #tpu.memory_space<vmem>>, vector<1x128xf32>
    %12 = arith.truncf %9 : vector<16x128xf32> to vector<16x128xbf16>
    %cst_10 = arith.constant dense<0.000000e+00> : vector<16x128xf32>
    %13 = tpu.matmul %12, %10, %cst_10 {dimension_numbers = #tpu.dot_dimension_numbers<[1], [0], [0], [1], [0, 0, 1, 1], [], []>} : vector<16x128xbf16>, vector<128x128xbf16>, vector<16x128xf32> -> vector<16x128xf32>
    %14 = vector.broadcast %11 : vector<1x128xf32> to vector<16x128xf32>
    %15 = arith.addf %13, %14 : vector<16x128xf32>
    %cst_11 = arith.constant 0.00999999977 : f32
    %16 = vector.broadcast %cst_11 : f32 to vector<16x128xf32>
    %17 = arith.mulf %16, %15 : vector<16x128xf32>
    %18 = arith.maximumf %15, %17 : vector<16x128xf32>
    %c0_12 = arith.constant 0 : index
    %c0_13 = arith.constant 0 : index
    %19 = vector.load %arg6[%c0_12, %c0_13] : memref<128x128xbf16, #tpu.memory_space<vmem>>, vector<128x128xbf16>
    %c0_14 = arith.constant 0 : index
    %c0_15 = arith.constant 0 : index
    %20 = vector.load %arg7[%c0_14, %c0_15] : memref<1x128xf32, #tpu.memory_space<vmem>>, vector<1x128xf32>
    %21 = arith.truncf %18 : vector<16x128xf32> to vector<16x128xbf16>
    %cst_16 = arith.constant dense<0.000000e+00> : vector<16x128xf32>
    %22 = tpu.matmul %21, %19, %cst_16 {dimension_numbers = #tpu.dot_dimension_numbers<[1], [0], [0], [1], [0, 0, 1, 1], [], []>} : vector<16x128xbf16>, vector<128x128xbf16>, vector<16x128xf32> -> vector<16x128xf32>
    %23 = vector.broadcast %20 : vector<1x128xf32> to vector<16x128xf32>
    %24 = arith.addf %22, %23 : vector<16x128xf32>
    %cst_17 = arith.constant 0.00999999977 : f32
    %25 = vector.broadcast %cst_17 : f32 to vector<16x128xf32>
    %26 = arith.mulf %25, %24 : vector<16x128xf32>
    %27 = arith.maximumf %24, %26 : vector<16x128xf32>
    %28 = arith.truncf %27 : vector<16x128xf32> to vector<16x128xbf16>
    %c0_18 = arith.constant 0 : index
    %c0_19 = arith.constant 0 : index
    %29 = vector.load %arg8[%c0_18, %c0_19] : memref<128x16xbf16, #tpu.memory_space<vmem>>, vector<128x16xbf16>
    %cst_20 = arith.constant dense<0.000000e+00> : vector<16x16xf32>
    %30 = tpu.matmul %28, %29, %cst_20 {dimension_numbers = #tpu.dot_dimension_numbers<[1], [0], [0], [1], [0, 0, 1, 1], [], []>} : vector<16x128xbf16>, vector<128x16xbf16>, vector<16x16xf32> -> vector<16x16xf32>
    %c0_21 = arith.constant 0 : index
    %c0_22 = arith.constant 0 : index
    %31 = vector.load %arg9[%c0_21, %c0_22] : memref<1x16xf32, #tpu.memory_space<vmem>>, vector<1x16xf32>
    %32 = vector.broadcast %31 : vector<1x16xf32> to vector<16x16xf32>
    %33 = arith.addf %30, %32 : vector<16x16xf32>
    %34 = arith.addf %0, %33 : vector<16x16xf32>
    %c0_23 = arith.constant 0 : index
    %c0_24 = arith.constant 0 : index
    %35 = vector.load %arg10[%c0_23, %c0_24] : memref<16x16xf32, #tpu.memory_space<vmem>>, vector<16x16xf32>
    tpu.vector_store %arg10[%c0_23, %c0_24], %34 {strides = array<i32>} : memref<16x16xf32, #tpu.memory_space<vmem>>, vector<16x16xf32>,
    return
  }
  func.func @transform_0(%arg0: i32) -> (i32, i32) {
    %c0_i32 = arith.constant 0 : i32
    %c0_i32_0 = arith.constant 0 : i32
    return %arg0, %c0_i32 : i32, i32
  }
  func.func @transform_1(%arg0: i32) -> (i32, i32) {
    %c0_i32 = arith.constant 0 : i32
    %c0_i32_0 = arith.constant 0 : i32
    %c0_i32_1 = arith.constant 0 : i32
    return %c0_i32, %c0_i32_0 : i32, i32
  }
  func.func @transform_2(%arg0: i32) -> (i32, i32) {
    %c0_i32 = arith.constant 0 : i32
    %c0_i32_0 = arith.constant 0 : i32
    %c0_i32_1 = arith.constant 0 : i32
    return %c0_i32, %c0_i32_0 : i32, i32
  }
  func.func @transform_3(%arg0: i32) -> (i32, i32) {
    %c0_i32 = arith.constant 0 : i32
    %c0_i32_0 = arith.constant 0 : i32
    %c0_i32_1 = arith.constant 0 : i32
    return %c0_i32, %c0_i32_0 : i32, i32
  }
  func.func @transform_4(%arg0: i32) -> (i32, i32) {
    %c0_i32 = arith.constant 0 : i32
    %c0_i32_0 = arith.constant 0 : i32
    %c0_i32_1 = arith.constant 0 : i32
    return %c0_i32, %c0_i32_0 : i32, i32
  }
  func.func @transform_5(%arg0: i32) -> (i32, i32) {
    %c0_i32 = arith.constant 0 : i32
    %c0_i32_0 = arith.constant 0 : i32
    %c0_i32_1 = arith.constant 0 : i32
    return %c0_i32, %c0_i32_0 : i32, i32
  }
  func.func @transform_6(%arg0: i32) -> (i32, i32) {
    %c0_i32 = arith.constant 0 : i32
    %c0_i32_0 = arith.constant 0 : i32
    %c0_i32_1 = arith.constant 0 : i32
    return %c0_i32, %c0_i32_0 : i32, i32
  }
  func.func @transform_7(%arg0: i32) -> (i32, i32) {
    %c0_i32 = arith.constant 0 : i32
    %c0_i32_0 = arith.constant 0 : i32
    %c0_i32_1 = arith.constant 0 : i32
    return %c0_i32, %c0_i32_0 : i32, i32
  }
  func.func @transform_8(%arg0: i32) -> (i32, i32) {
    %c0_i32 = arith.constant 0 : i32
    %c0_i32_0 = arith.constant 0 : i32
    %c0_i32_1 = arith.constant 0 : i32
    return %c0_i32, %c0_i32_0 : i32, i32
  }
  func.func @transform_9(%arg0: i32) -> (i32, i32) {
    %c0_i32 = arith.constant 0 : i32
    %c0_i32_0 = arith.constant 0 : i32
    return %arg0, %c0_i32 : i32, i32
  }
}

module attributes {stable_mosaic.version = 11 : i64} {
  func.func @_coupling_kernel(%arg0: i32, %arg1: memref<16x16xf32, #tpu.memory_space<vmem>>, %arg2: memref<16x128xbf16, #tpu.memory_space<vmem>>, %arg3: memref<1x128xf32, #tpu.memory_space<vmem>>, %arg4: memref<128x128xbf16, #tpu.memory_space<vmem>>, %arg5: memref<1x128xf32, #tpu.memory_space<vmem>>, %arg6: memref<128x128xbf16, #tpu.memory_space<vmem>>, %arg7: memref<1x128xf32, #tpu.memory_space<vmem>>, %arg8: memref<128x16xbf16, #tpu.memory_space<vmem>>, %arg9: memref<1x16xf32, #tpu.memory_space<vmem>>, %arg10: memref<16x16xf32, #tpu.memory_space<vmem>>) attributes {dimension_semantics = [#tpu.dimension_semantics<parallel>], iteration_bounds = array<i64: 1>, scalar_prefetch = 0 : i64, scratch_operands = 0 : i64, tpu.core_type = #tpu.core_type<tc>, window_params = [{transform_indices = @transform_0, window_bounds = array<i64: 16, 16>}, {pipeline_mode = #tpu.pipeline_mode<synchronous>, transform_indices = @transform_1, window_bounds = array<i64: 16, 128>}, {pipeline_mode = #tpu.pipeline_mode<synchronous>, transform_indices = @transform_2, window_bounds = array<i64: 1, 128>}, {pipeline_mode = #tpu.pipeline_mode<synchronous>, transform_indices = @transform_3, window_bounds = array<i64: 128, 128>}, {pipeline_mode = #tpu.pipeline_mode<synchronous>, transform_indices = @transform_4, window_bounds = array<i64: 1, 128>}, {pipeline_mode = #tpu.pipeline_mode<synchronous>, transform_indices = @transform_5, window_bounds = array<i64: 128, 128>}, {pipeline_mode = #tpu.pipeline_mode<synchronous>, transform_indices = @transform_6, window_bounds = array<i64: 1, 128>}, {pipeline_mode = #tpu.pipeline_mode<synchronous>, transform_indices = @transform_7, window_bounds = array<i64: 128, 16>}, {pipeline_mode = #tpu.pipeline_mode<synchronous>, transform_indices = @transform_8, window_bounds = array<i64: 1, 16>}, {transform_indices = @transform_9, window_bounds = array<i64: 16, 16>}]} {
    %c0 = arith.constant 0 : index
    %c0_0 = arith.constant 0 : index
    %0 = vector.load %arg1[%c0, %c0_0] : memref<16x16xf32, #tpu.memory_space<vmem>>, vector<16x16xf32>
    %1 = arith.truncf %0 : vector<16x16xf32> to vector<16x16xbf16>
    %c0_1 = arith.constant 0 : index
    %c0_2 = arith.constant 0 : index
    %2 = vector.load %arg2[%c0_1, %c0_2] : memref<16x128xbf16, #tpu.memory_space<vmem>>, vector<16x128xbf16>
    %cst = arith.constant dense<0.000000e+00> : vector<16x128xf32>
    %3 = tpu.matmul %1, %2, %cst {dimension_numbers = #tpu.dot_dimension_numbers<[1], [0], [0], [1], [0, 0, 1, 1], [], []>} : vector<16x16xbf16>, vector<16x128xbf16>, vector<16x128xf32> -> vector<16x128xf32>
    %c0_3 = arith.constant 0 : index
    %c0_4 = arith.constant 0 : index
    %4 = vector.load %arg3[%c0_3, %c0_4] : memref<1x128xf32, #tpu.memory_space<vmem>>, vector<1x128xf32>
    %5 = vector.broadcast %4 : vector<1x128xf32> to vector<16x128xf32>
    %6 = arith.addf %3, %5 : vector<16x128xf32>
    %cst_5 = arith.constant 0.00999999977 : f32
    %7 = vector.broadcast %cst_5 : f32 to vector<16x128xf32>
    %8 = arith.mulf %7, %6 : vector<16x128xf32>
    %9 = arith.maximumf %6, %8 : vector<16x128xf32>
    %c0_6 = arith.constant 0 : index
    %c0_7 = arith.constant 0 : index
    %10 = vector.load %arg4[%c0_6, %c0_7] : memref<128x128xbf16, #tpu.memory_space<vmem>>, vector<128x128xbf16>
    %c0_8 = arith.constant 0 : index
    %c0_9 = arith.constant 0 : index
    %11 = vector.load %arg5[%c0_8, %c0_9] : memref<1x128xf32, #tpu.memory_space<vmem>>, vector<1x128xf32>
    %12 = arith.truncf %9 : vector<16x128xf32> to vector<16x128xbf16>
    %cst_10 = arith.constant dense<0.000000e+00> : vector<16x128xf32>
    %13 = tpu.matmul %12, %10, %cst_10 {dimension_numbers = #tpu.dot_dimension_numbers<[1], [0], [0], [1], [0, 0, 1, 1], [], []>} : vector<16x128xbf16>, vector<128x128xbf16>, vector<16x128xf32> -> vector<16x128xf32>
    %14 = vector.broadcast %11 : vector<1x128xf32> to vector<16x128xf32>
    %15 = arith.addf %13, %14 : vector<16x128xf32>
    %cst_11 = arith.constant 0.00999999977 : f32
    %16 = vector.broadcast %cst_11 : f32 to vector<16x128xf32>
    %17 = arith.mulf %16, %15 : vector<16x128xf32>
    %18 = arith.maximumf %15, %17 : vector<16x128xf32>
    %c0_12 = arith.constant 0 : index
    %c0_13 = arith.constant 0 : index
    %19 = vector.load %arg6[%c0_12, %c0_13] : memref<128x128xbf16, #tpu.memory_space<vmem>>, vector<128x128xbf16>
    %c0_14 = arith.constant 0 : index
    %c0_15 = arith.constant 0 : index
    %20 = vector.load %arg7[%c0_14, %c0_15] : memref<1x128xf32, #tpu.memory_space<vmem>>, vector<1x128xf32>
    %21 = arith.truncf %18 : vector<16x128xf32> to vector<16x128xbf16>
    %cst_16 = arith.constant dense<0.000000e+00> : vector<16x128xf32>
    %22 = tpu.matmul %21, %19, %cst_16 {dimension_numbers = #tpu.dot_dimension_numbers<[1], [0], [0], [1], [0, 0, 1, 1], [], []>} : vector<16x128xbf16>, vector<128x128xbf16>, vector<16x128xf32> -> vector<16x128xf32>
    %23 = vector.broadcast %20 : vector<1x128xf32> to vector<16x128xf32>
    %24 = arith.addf %22, %23 : vector<16x128xf32>
    %cst_17 = arith.constant 0.00999999977 : f32
    %25 = vector.broadcast %cst_17 : f32 to vector<16x128xf32>
    %26 = arith.mulf %25, %24 : vector<16x128xf32>
    %27 = arith.maximumf %24, %26 : vector<16x128xf32>
    %28 = arith.truncf %27 : vector<16x128xf32> to vector<16x128xbf16>
    %c0_18 = arith.constant 0 : index
    %c0_19 = arith.constant 0 : index
    %29 = vector.load %arg8[%c0_18, %c0_19] : memref<128x16xbf16, #tpu.memory_space<vmem>>, vector<128x16xbf16>
    %cst_20 = arith.constant dense<0.000000e+00> : vector<16x16xf32>
    %30 = tpu.matmul %28, %29, %cst_20 {dimension_numbers = #tpu.dot_dimension_numbers<[1], [0], [0], [1], [0, 0, 1, 1], [], []>} : vector<16x128xbf16>, vector<128x16xbf16>, vector<16x16xf32> -> vector<16x16xf32>
    %c0_21 = arith.constant 0 : index
    %c0_22 = arith.constant 0 : index
    %31 = vector.load %arg9[%c0_21, %c0_22] : memref<1x16xf32, #tpu.memory_space<vmem>>, vector<1x16xf32>
    %32 = vector.broadcast %31 : vector<1x16xf32> to vector<16x16xf32>
    %33 = arith.addf %30, %32 : vector<16x16xf32>
    %34 = arith.addf %0, %33 : vector<16x16xf32>
    %c0_23 = arith.constant 0 : index
    %c0_24 = arith.constant 0 : index
    %35 = vector.load %arg10[%c0_23, %c0_24] : memref<16x16xf32, #tpu.memory_space<vmem>>, vector<16x16xf32>
    tpu.vector_store %arg10[%c0_23, %c0_24], %34 {strides = array<i32>} : memref<16x16xf32, #tpu.memory_space<vmem>>, vector<16x16xf32>,
    return
  }
  func.func @transform_0(%arg0: i32) -> (i32, i32) {
    %c0_i32 = arith.constant 0 : i32
    %c0_i32_0 = arith.constant 0 : i32
    return %arg0, %c0_i32 : i32, i32
  }
  func.func @transform_1(%arg0: i32) -> (i32, i32) {
    %c0_i32 = arith.constant 0 : i32
    %c0_i32_0 = arith.constant 0 : i32
    %c0_i32_1 = arith.constant 0 : i32
    return %c0_i32, %c0_i32_0 : i32, i32
  }
  func.func @transform_2(%arg0: i32) -> (i32, i32) {
    %c0_i32 = arith.constant 0 : i32
    %c0_i32_0 = arith.constant 0 : i32
    %c0_i32_1 = arith.constant 0 : i32
    return %c0_i32, %c0_i32_0 : i32, i32
  }
  func.func @transform_3(%arg0: i32) -> (i32, i32) {
    %c0_i32 = arith.constant 0 : i32
    %c0_i32_0 = arith.constant 0 : i32
    %c0_i32_1 = arith.constant 0 : i32
    return %c0_i32, %c0_i32_0 : i32, i32
  }
  func.func @transform_4(%arg0: i32) -> (i32, i32) {
    %c0_i32 = arith.constant 0 : i32
    %c0_i32_0 = arith.constant 0 : i32
    %c0_i32_1 = arith.constant 0 : i32
    return %c0_i32, %c0_i32_0 : i32, i32
  }
  func.func @transform_5(%arg0: i32) -> (i32, i32) {
    %c0_i32 = arith.constant 0 : i32
    %c0_i32_0 = arith.constant 0 : i32
    %c0_i32_1 = arith.constant 0 : i32
    return %c0_i32, %c0_i32_0 : i32, i32
  }
  func.func @transform_6(%arg0: i32) -> (i32, i32) {
    %c0_i32 = arith.constant 0 : i32
    %c0_i32_0 = arith.constant 0 : i32
    %c0_i32_1 = arith.constant 0 : i32
    return %c0_i32, %c0_i32_0 : i32, i32
  }
  func.func @transform_7(%arg0: i32) -> (i32, i32) {
    %c0_i32 = arith.constant 0 : i32
    %c0_i32_0 = arith.constant 0 : i32
    %c0_i32_1 = arith.constant 0 : i32
    return %c0_i32, %c0_i32_0 : i32, i32
  }
  func.func @transform_8(%arg0: i32) -> (i32, i32) {
    %c0_i32 = arith.constant 0 : i32
    %c0_i32_0 = arith.constant 0 : i32
    %c0_i32_1 = arith.constant 0 : i32
    return %c0_i32, %c0_i32_0 : i32, i32
  }
  func.func @transform_9(%arg0: i32) -> (i32, i32) {
    %c0_i32 = arith.constant 0 : i32
    %c0_i32_0 = arith.constant 0 : i32
    return %arg0, %c0_i32 : i32, i32
  }
}

</mosaic_0001>

<llo_original>
// kernel: _forward_impl.1
$region0: #{_forward_impl.1}
  #allocation0 [shape = 'u32[]', space=smem, size = 0x4, offset = 0x4, fixed_abs, tag = 'smem constant byte address 0x4 - core index']
  #allocation1 [shape = 'u32[144,128]{1,0:T(1,128)}', space=vmem, size = 0x12000, scoped, tag = 'internal scratch']
  %s0 = inlined_call_operand.vmem [shape: f32[16,16], index: 0, kind: input, shape index: {}, may-alias: {0,9}]
  %s1 = inlined_call_operand.vmem [shape: bf16[16,128], index: 1, kind: input, shape index: {}]
  %s2 = inlined_call_operand.vmem [shape: f32[1,128], index: 2, kind: input, shape index: {}]
  %s3 = inlined_call_operand.vmem [shape: bf16[128,128], index: 3, kind: input, shape index: {}]
  %s4 = inlined_call_operand.vmem [shape: f32[1,128], index: 4, kind: input, shape index: {}]
  %s5 = inlined_call_operand.vmem [shape: bf16[128,128], index: 5, kind: input, shape index: {}]
  %s6 = inlined_call_operand.vmem [shape: f32[1,128], index: 6, kind: input, shape index: {}]
  %s7 = inlined_call_operand.vmem [shape: bf16[128,16], index: 7, kind: input, shape index: {}]
  %s8 = inlined_call_operand.vmem [shape: f32[1,16], index: 8, kind: input, shape index: {}]
  %s9 = inlined_call_operand.vmem [shape: f32[16,16], index: 9, kind: output, shape index: {}, may-alias: {0,9}]
  %s10 = sld [smem:[#allocation0]]
  $region46: #{_forward_impl.1} parent=0
    _
  %s12 = ssub.s32 1, %s10
  %s13 = scalar_select 0, %s12, %s10
  // Predicated region
  $region2: #{_forward_impl.1} parent=0 // pred_check
    _
  $region3: #{_forward_impl.1} parent=0 // pred_check_branch
    %15 = sbr.rel (0) target = $region5
  $region4: #{_forward_impl.1} parent=0 // pred_region
    _
  $region5: #{_forward_impl.1} parent=0 // pred_fallthru
    _
  // Predicated region
  $region6: #{_forward_impl.1} parent=0 // pred_check
    _
  $region7: #{_forward_impl.1} parent=0 // pred_check_branch
    %17 = sbr.rel (0) target = $region9
  $region8: #{_forward_impl.1} parent=0 // pred_region
    _
  $region9: #{_forward_impl.1} parent=0 // pred_fallthru
    _
  // Predicated region
  $region10: #{_forward_impl.1} parent=0 // pred_check
    _
  $region11: #{_forward_impl.1} parent=0 // pred_check_branch
    %19 = sbr.rel (0) target = $region13
  $region12: #{_forward_impl.1} parent=0 // pred_region
    _
  $region13: #{_forward_impl.1} parent=0 // pred_fallthru
    _
  // Predicated region
  $region14: #{_forward_impl.1} parent=0 // pred_check
    _
  $region15: #{_forward_impl.1} parent=0 // pred_check_branch
    %21 = sbr.rel (0) target = $region17
  $region16: #{_forward_impl.1} parent=0 // pred_region
    _
  $region17: #{_forward_impl.1} parent=0 // pred_fallthru
    _
  // Predicated region
  $region18: #{_forward_impl.1} parent=0 // pred_check
    _
  $region19: #{_forward_impl.1} parent=0 // pred_check_branch
    %23 = sbr.rel (0) target = $region21
  $region20: #{_forward_impl.1} parent=0 // pred_region
    _
  $region21: #{_forward_impl.1} parent=0 // pred_fallthru
    _
  // Predicated region
  $region22: #{_forward_impl.1} parent=0 // pred_check
    _
  $region23: #{_forward_impl.1} parent=0 // pred_check_branch
    %25 = sbr.rel (0) target = $region25
  $region24: #{_forward_impl.1} parent=0 // pred_region
    _
  $region25: #{_forward_impl.1} parent=0 // pred_fallthru
    _
  // Predicated region
  $region26: #{_forward_impl.1} parent=0 // pred_check
    _
  $region27: #{_forward_impl.1} parent=0 // pred_check_branch
    %27 = sbr.rel (0) target = $region29
  $region28: #{_forward_impl.1} parent=0 // pred_region
    _
  $region29: #{_forward_impl.1} parent=0 // pred_fallthru
    _
  // Predicated region
  $region30: #{_forward_impl.1} parent=0 // pred_check
    _
  $region31: #{_forward_impl.1} parent=0 // pred_check_branch
    %29 = sbr.rel (0) target = $region33
  $region32: #{_forward_impl.1} parent=0 // pred_region
    _
  $region33: #{_forward_impl.1} parent=0 // pred_fallthru
    _
  // Predicated region
  $region34: #{_forward_impl.1} parent=0 // pred_check
    _
  $region35: #{_forward_impl.1} parent=0 // pred_check_branch
    %31 = sbr.rel (0) target = $region37
  $region36: #{_forward_impl.1} parent=0 // pred_region
    _
  $region37: #{_forward_impl.1} parent=0 // pred_fallthru
    _
  %v33 = vld [vmem:[%s0] sm:$0xff]
  %v34 = vld [vmem:[%s0 + $0x8] sm:$0xff]
  %v35 = vpack.c.bf16 %v34, %v33
  %v36 = vld [vmem:[%s1] sm:$0xf]
  %v37 = vld [vmem:[%s1 + $0x4] sm:$0xf]
  %v38 = vld [vmem:[%s2] sm:$0x1]
  %v40 = vlaneseq
  %v41 = vshrl.u32 %v40, 7
  %v42 = vsub.s32 0, %v41
  %v43 = vrot.slane %v38, %v42
  %v47 = vunpack.c.l.b16 %v36
  %v48 = vunpack.c.l.b16 %v37
  %v49 = vpack.c.b16 %v48, %v47
  %vm51 = vcmask 130048
  %v53 = vsel %vm51, %v35, 0
  %55 = vmatprep.subr.bf16.mxu0 0
  %56 = vmatpush1.bf16.msra.mxu0 %v49
  %57 = vmatprep.subr.bf16.mxu0 0
  %58 = vmatpush1.bf16.msra.mxu0 0
  %59 = vmatprep.subr.bf16.mxu0 0
  %60 = vmatpush1.bf16.msra.mxu0 0
  %61 = vmatprep.subr.bf16.mxu0 0
  %62 = vmatpush1.bf16.msra.mxu0 0
  %63 = vmatprep.subr.bf16.mxu0 0
  %64 = vmatpush1.bf16.msra.mxu0 0
  %65 = vmatprep.subr.bf16.mxu0 0
  %66 = vmatpush1.bf16.msra.mxu0 0
  %67 = vmatprep.subr.bf16.mxu0 0
  %68 = vmatpush1.bf16.msra.mxu0 0
  %69 = vmatprep.subr.bf16.mxu0 0
  %70 = vmatpush1.bf16.msra.mxu0 0
  %71 = vmatprep.subr.bf16.mxu0 0
  %72 = vmatpush1.bf16.msra.mxu0 0
  %73 = vmatprep.subr.bf16.mxu0 0
  %74 = vmatpush1.bf16.msra.mxu0 0
  %75 = vmatprep.subr.bf16.mxu0 0
  %76 = vmatpush1.bf16.msra.mxu0 0
  %77 = vmatprep.subr.bf16.mxu0 0
  %78 = vmatpush1.bf16.msra.mxu0 0
  %79 = vmatprep.subr.bf16.mxu0 0
  %80 = vmatpush1.bf16.msra.mxu0 0
  %81 = vmatprep.subr.bf16.mxu0 0
  %82 = vmatpush1.bf16.msra.mxu0 0
  %83 = vmatprep.subr.bf16.mxu0 0
  %84 = vmatpush1.bf16.msra.mxu0 0
  %85 = vmatprep.subr.bf16.mxu0 0
  %86 = vmatpush1.bf16.msra.mxu0 0
  %87 = vmatprep.mubr.bf16.mxu0 0
  %88 = vmatmul.mubr.bf16.gmra.mrb[0].mxu0 %v53
  %v89 = vpop.f32.mrb[0].mxu0
  %v90 = vadd.f32 %v43, %v89
  %v91 = vpop.f32.mrb[0].mxu0
  %v92 = vpop.f32.mrb[0].mxu0
  %v93 = vadd.f32 %v43, %v92
  %v94 = vpop.f32.mrb[0].mxu0
  %95 = vdwg.mxu0
  %v96 = vmul.f32 %v90, 0.01
  %v97 = vmul.f32 %v93, 0.01
  %v98 = vmax.f32 %v90, %v96
  %v99 = vmax.f32 %v93, %v97
  %v100 = vld [vmem:[%s3] sm:$0xf]
  %v101 = vld [vmem:[%s3 + $0x4] sm:$0xf]
  %v102 = vld [vmem:[%s3 + $0x8] sm:$0xf]
  %v103 = vld [vmem:[%s3 + $0xc] sm:$0xf]
  %v104 = vld [vmem:[%s3 + $0x10] sm:$0xf]
  %v105 = vld [vmem:[%s3 + $0x14] sm:$0xf]
  %v106 = vld [vmem:[%s3 + $0x18] sm:$0xf]
  %v107 = vld [vmem:[%s3 + $0x1c] sm:$0xf]
  %v108 = vld [vmem:[%s3 + $0x20] sm:$0xf]
  %v109 = vld [vmem:[%s3 + $0x24] sm:$0xf]
  %v110 = vld [vmem:[%s3 + $0x28] sm:$0xf]
  %v111 = vld [vmem:[%s3 + $0x2c] sm:$0xf]
  %v112 = vld [vmem:[%s3 + $0x30] sm:$0xf]
  %v113 = vld [vmem:[%s3 + $0x34] sm:$0xf]
  %v114 = vld [vmem:[%s3 + $0x38] sm:$0xf]
  %v115 = vld [vmem:[%s3 + $0x3c] sm:$0xf]
  %v116 = vld [vmem:[%s4] sm:$0x1]
  %v117 = vpack.c.bf16 %v99, %v98
  %v119 = vlaneseq
  %v120 = vshrl.u32 %v119, 7
  %v121 = vsub.s32 0, %v120
  %v122 = vrot.slane %v116, %v121
  %v140 = vunpack.c.l.b16 %v100
  %v141 = vunpack.c.l.b16 %v101
  %v142 = vunpack.c.l.b16 %v102
  %v143 = vunpack.c.l.b16 %v103
  %v144 = vunpack.c.l.b16 %v104
  %v145 = vunpack.c.l.b16 %v105
  %v146 = vunpack.c.l.b16 %v106
  %v147 = vunpack.c.l.b16 %v107
  %v148 = vunpack.c.l.b16 %v108
  %v149 = vunpack.c.l.b16 %v109
  %v150 = vunpack.c.l.b16 %v110
  %v151 = vunpack.c.l.b16 %v111
  %v152 = vunpack.c.l.b16 %v112
  %v153 = vunpack.c.l.b16 %v113
  %v154 = vunpack.c.l.b16 %v114
  %v155 = vunpack.c.l.b16 %v115
  %v156 = vpack.c.b16 %v141, %v140
  %v157 = vpack.c.b16 %v143, %v142
  %v158 = vpack.c.b16 %v145, %v144
  %v159 = vpack.c.b16 %v147, %v146
  %v160 = vpack.c.b16 %v149, %v148
  %v161 = vpack.c.b16 %v151, %v150
  %v162 = vpack.c.b16 %v153, %v152
  %v163 = vpack.c.b16 %v155, %v154
  %172 = vmatprep.subr.bf16.mxu0 0
  %173 = vmatpush1.bf16.msra.mxu0 %v156
  %174 = vmatprep.subr.bf16.mxu0 0
  %175 = vmatpush1.bf16.msra.mxu0 %v157
  %176 = vmatprep.subr.bf16.mxu0 0
  %177 = vmatpush1.bf16.msra.mxu0 %v158
  %178 = vmatprep.subr.bf16.mxu0 0
  %179 = vmatpush1.bf16.msra.mxu0 %v159
  %180 = vmatprep.subr.bf16.mxu0 0
  %181 = vmatpush1.bf16.msra.mxu0 %v160
  %182 = vmatprep.subr.bf16.mxu0 0
  %183 = vmatpush1.bf16.msra.mxu0 %v161
  %184 = vmatprep.subr.bf16.mxu0 0
  %185 = vmatpush1.bf16.msra.mxu0 %v162
  %186 = vmatprep.subr.bf16.mxu0 0
  %187 = vmatpush1.bf16.msra.mxu0 %v163
  %188 = vmatprep.subr.bf16.mxu0 0
  %189 = vmatpush1.bf16.msra.mxu0 0
  %190 = vmatprep.subr.bf16.mxu0 0
  %191 = vmatpush1.bf16.msra.mxu0 0
  %192 = vmatprep.subr.bf16.mxu0 0
  %193 = vmatpush1.bf16.msra.mxu0 0
  %194 = vmatprep.subr.bf16.mxu0 0
  %195 = vmatpush1.bf16.msra.mxu0 0
  %196 = vmatprep.subr.bf16.mxu0 0
  %197 = vmatpush1.bf16.msra.mxu0 0
  %198 = vmatprep.subr.bf16.mxu0 0
  %199 = vmatpush1.bf16.msra.mxu0 0
  %200 = vmatprep.subr.bf16.mxu0 0
  %201 = vmatpush1.bf16.msra.mxu0 0
  %202 = vmatprep.subr.bf16.mxu0 0
  %203 = vmatpush1.bf16.msra.mxu0 0
  %204 = vmatprep.mubr.bf16.mxu0 0
  %205 = vmatmul.mubr.bf16.gmra.mrb[0].mxu0 %v117
  %v206 = vpop.f32.mrb[0].mxu0
  %v207 = vadd.f32 %v122, %v206
  %v208 = vpop.f32.mrb[0].mxu0
  %v209 = vpop.f32.mrb[0].mxu0
  %v210 = vadd.f32 %v122, %v209
  %v211 = vpop.f32.mrb[0].mxu0
  %212 = vdwg.mxu0
  %v213 = vmul.f32 %v207, 0.01
  %v214 = vmul.f32 %v210, 0.01
  %v215 = vmax.f32 %v207, %v213
  %v216 = vmax.f32 %v210, %v214
  %v217 = vld [vmem:[%s5] sm:$0xf]
  %v218 = vld [vmem:[%s5 + $0x4] sm:$0xf]
  %v219 = vld [vmem:[%s5 + $0x8] sm:$0xf]
  %v220 = vld [vmem:[%s5 + $0xc] sm:$0xf]
  %v221 = vld [vmem:[%s5 + $0x10] sm:$0xf]
  %v222 = vld [vmem:[%s5 + $0x14] sm:$0xf]
  %v223 = vld [vmem:[%s5 + $0x18] sm:$0xf]
  %v224 = vld [vmem:[%s5 + $0x1c] sm:$0xf]
  %v225 = vld [vmem:[%s5 + $0x20] sm:$0xf]
  %v226 = vld [vmem:[%s5 + $0x24] sm:$0xf]
  %v227 = vld [vmem:[%s5 + $0x28] sm:$0xf]
  %v228 = vld [vmem:[%s5 + $0x2c] sm:$0xf]
  %v229 = vld [vmem:[%s5 + $0x30] sm:$0xf]
  %v230 = vld [vmem:[%s5 + $0x34] sm:$0xf]
  %v231 = vld [vmem:[%s5 + $0x38] sm:$0xf]
  %v232 = vld [vmem:[%s5 + $0x3c] sm:$0xf]
  %v233 = vld [vmem:[%s6] sm:$0x1]
  %v234 = vpack.c.bf16 %v216, %v215
  %v236 = vlaneseq
  %v237 = vshrl.u32 %v236, 7
  %v238 = vsub.s32 0, %v237
  %v239 = vrot.slane %v233, %v238
  %v257 = vunpack.c.l.b16 %v217
  %v258 = vunpack.c.l.b16 %v218
  %v259 = vunpack.c.l.b16 %v219
  %v260 = vunpack.c.l.b16 %v220
  %v261 = vunpack.c.l.b16 %v221
  %v262 = vunpack.c.l.b16 %v222
  %v263 = vunpack.c.l.b16 %v223
  %v264 = vunpack.c.l.b16 %v224
  %v265 = vunpack.c.l.b16 %v225
  %v266 = vunpack.c.l.b16 %v226
  %v267 = vunpack.c.l.b16 %v227
  %v268 = vunpack.c.l.b16 %v228
  %v269 = vunpack.c.l.b16 %v229
  %v270 = vunpack.c.l.b16 %v230
  %v271 = vunpack.c.l.b16 %v231
  %v272 = vunpack.c.l.b16 %v232
  %v273 = vpack.c.b16 %v258, %v257
  %v274 = vpack.c.b16 %v260, %v259
  %v275 = vpack.c.b16 %v262, %v261
  %v276 = vpack.c.b16 %v264, %v263
  %v277 = vpack.c.b16 %v266, %v265
  %v278 = vpack.c.b16 %v268, %v267
  %v279 = vpack.c.b16 %v270, %v269
  %v280 = vpack.c.b16 %v272, %v271
  %289 = vmatprep.subr.bf16.mxu0 0
  %290 = vmatpush1.bf16.msra.mxu0 %v273
  %291 = vmatprep.subr.bf16.mxu0 0
  %292 = vmatpush1.bf16.msra.mxu0 %v274
  %293 = vmatprep.subr.bf16.mxu0 0
  %294 = vmatpush1.bf16.msra.mxu0 %v275
  %295 = vmatprep.subr.bf16.mxu0 0
  %296 = vmatpush1.bf16.msra.mxu0 %v276
  %297 = vmatprep.subr.bf16.mxu0 0
  %298 = vmatpush1.bf16.msra.mxu0 %v277
  %299 = vmatprep.subr.bf16.mxu0 0
  %300 = vmatpush1.bf16.msra.mxu0 %v278
  %301 = vmatprep.subr.bf16.mxu0 0
  %302 = vmatpush1.bf16.msra.mxu0 %v279
  %303 = vmatprep.subr.bf16.mxu0 0
  %304 = vmatpush1.bf16.msra.mxu0 %v280
  %305 = vmatprep.subr.bf16.mxu0 0
  %306 = vmatpush1.bf16.msra.mxu0 0
  %307 = vmatprep.subr.bf16.mxu0 0
  %308 = vmatpush1.bf16.msra.mxu0 0
  %309 = vmatprep.subr.bf16.mxu0 0
  %310 = vmatpush1.bf16.msra.mxu0 0
  %311 = vmatprep.subr.bf16.mxu0 0
  %312 = vmatpush1.bf16.msra.mxu0 0
  %313 = vmatprep.subr.bf16.mxu0 0
  %314 = vmatpush1.bf16.msra.mxu0 0
  %315 = vmatprep.subr.bf16.mxu0 0
  %316 = vmatpush1.bf16.msra.mxu0 0
  %317 = vmatprep.subr.bf16.mxu0 0
  %318 = vmatpush1.bf16.msra.mxu0 0
  %319 = vmatprep.subr.bf16.mxu0 0
  %320 = vmatpush1.bf16.msra.mxu0 0
  %321 = vmatprep.mubr.bf16.mxu0 0
  %322 = vmatmul.mubr.bf16.gmra.mrb[0].mxu0 %v234
  %v323 = vpop.f32.mrb[0].mxu0
  %v324 = vadd.f32 %v239, %v323
  %v325 = vpop.f32.mrb[0].mxu0
  %v326 = vpop.f32.mrb[0].mxu0
  %v327 = vadd.f32 %v239, %v326
  %v328 = vpop.f32.mrb[0].mxu0
  %329 = vdwg.mxu0
  %v330 = vmul.f32 %v324, 0.01
  %v331 = vmul.f32 %v327, 0.01
  %v332 = vmax.f32 %v324, %v330
  %v333 = vmax.f32 %v327, %v331
  %v334 = vpack.c.bf16 %v333, %v332
  %v335 = vld [vmem:[%s7] sm:$0xf]
  %v336 = vld [vmem:[%s7 + $0x4] sm:$0xf]
  %v337 = vld [vmem:[%s7 + $0x8] sm:$0xf]
  %v338 = vld [vmem:[%s7 + $0xc] sm:$0xf]
  %v339 = vld [vmem:[%s7 + $0x10] sm:$0xf]
  %v340 = vld [vmem:[%s7 + $0x14] sm:$0xf]
  %v341 = vld [vmem:[%s7 + $0x18] sm:$0xf]
  %v342 = vld [vmem:[%s7 + $0x1c] sm:$0xf]
  %v343 = vld [vmem:[%s7 + $0x20] sm:$0xf]
  %v344 = vld [vmem:[%s7 + $0x24] sm:$0xf]
  %v345 = vld [vmem:[%s7 + $0x28] sm:$0xf]
  %v346 = vld [vmem:[%s7 + $0x2c] sm:$0xf]
  %v347 = vld [vmem:[%s7 + $0x30] sm:$0xf]
  %v348 = vld [vmem:[%s7 + $0x34] sm:$0xf]
  %v349 = vld [vmem:[%s7 + $0x38] sm:$0xf]
  %v350 = vld [vmem:[%s7 + $0x3c] sm:$0xf]
  %v351 = vld [vmem:[%s8] sm:$0x1]
  %v353 = vlaneseq
  %v354 = vshrl.u32 %v353, 7
  %v355 = vsub.s32 0, %v354
  %v356 = vrot.slane %v351, %v355
  %v374 = vunpack.c.l.b16 %v335
  %v375 = vunpack.c.l.b16 %v336
  %v376 = vunpack.c.l.b16 %v337
  %v377 = vunpack.c.l.b16 %v338
  %v378 = vunpack.c.l.b16 %v339
  %v379 = vunpack.c.l.b16 %v340
  %v380 = vunpack.c.l.b16 %v341
  %v381 = vunpack.c.l.b16 %v342
  %v382 = vunpack.c.l.b16 %v343
  %v383 = vunpack.c.l.b16 %v344
  %v384 = vunpack.c.l.b16 %v345
  %v385 = vunpack.c.l.b16 %v346
  %v386 = vunpack.c.l.b16 %v347
  %v387 = vunpack.c.l.b16 %v348
  %v388 = vunpack.c.l.b16 %v349
  %v389 = vunpack.c.l.b16 %v350
  %v390 = vpack.c.b16 %v375, %v374
  %v391 = vpack.c.b16 %v377, %v376
  %v392 = vpack.c.b16 %v379, %v378
  %v393 = vpack.c.b16 %v381, %v380
  %v394 = vpack.c.b16 %v383, %v382
  %v395 = vpack.c.b16 %v385, %v384
  %v396 = vpack.c.b16 %v387, %v386
  %v397 = vpack.c.b16 %v389, %v388
  %406 = vmatprep.subr.bf16.mxu0 0
  %407 = vmatpush1.bf16.msra.mxu0 %v390
  %408 = vmatprep.subr.bf16.mxu0 0
  %409 = vmatpush1.bf16.msra.mxu0 %v391
  %410 = vmatprep.subr.bf16.mxu0 0
  %411 = vmatpush1.bf16.msra.mxu0 %v392
  %412 = vmatprep.subr.bf16.mxu0 0
  %413 = vmatpush1.bf16.msra.mxu0 %v393
  %414 = vmatprep.subr.bf16.mxu0 0
  %415 = vmatpush1.bf16.msra.mxu0 %v394
  %416 = vmatprep.subr.bf16.mxu0 0
  %417 = vmatpush1.bf16.msra.mxu0 %v395
  %418 = vmatprep.subr.bf16.mxu0 0
  %419 = vmatpush1.bf16.msra.mxu0 %v396
  %420 = vmatprep.subr.bf16.mxu0 0
  %421 = vmatpush1.bf16.msra.mxu0 %v397
  %422 = vmatprep.subr.bf16.mxu0 0
  %423 = vmatpush1.bf16.msra.mxu0 0
  %424 = vmatprep.subr.bf16.mxu0 0
  %425 = vmatpush1.bf16.msra.mxu0 0
  %426 = vmatprep.subr.bf16.mxu0 0
  %427 = vmatpush1.bf16.msra.mxu0 0
  %428 = vmatprep.subr.bf16.mxu0 0
  %429 = vmatpush1.bf16.msra.mxu0 0
  %430 = vmatprep.subr.bf16.mxu0 0
  %431 = vmatpush1.bf16.msra.mxu0 0
  %432 = vmatprep.subr.bf16.mxu0 0
  %433 = vmatpush1.bf16.msra.mxu0 0
  %434 = vmatprep.subr.bf16.mxu0 0
  %435 = vmatpush1.bf16.msra.mxu0 0
  %436 = vmatprep.subr.bf16.mxu0 0
  %437 = vmatpush1.bf16.msra.mxu0 0
  %438 = vmatprep.mubr.bf16.mxu0 0
  %439 = vmatmul.mubr.bf16.gmra.mrb[0].mxu0 %v334
  %v440 = vpop.f32.mrb[0].mxu0
  %v441 = vadd.f32 %v356, %v440
  %v442 = vpop.f32.mrb[0].mxu0
  %v443 = vpop.f32.mrb[0].mxu0
  %v444 = vadd.f32 %v356, %v443
  %v445 = vpop.f32.mrb[0].mxu0
  %446 = vdwg.mxu0
  %v447 = vadd.f32 %v33, %v441
  %v448 = vadd.f32 %v34, %v444
  %449 = vst.msk [vmem:[%s9] sm:$0xff] %vm51, %v447
  %450 = vst.msk [vmem:[%s9 + $0x8] sm:$0xff] %vm51, %v448
  // Predicated region
  $region38: #{_forward_impl.1} parent=0 // pred_check
    _
  $region39: #{_forward_impl.1} parent=0 // pred_check_branch
    %452 = sbr.rel (0) target = $region41
  $region40: #{_forward_impl.1} parent=0 // pred_region
    _
  $region41: #{_forward_impl.1} parent=0 // pred_fallthru
    _
  // Predicated region
  $region42: #{_forward_impl.1} parent=0 // pred_check
    _
  $region43: #{_forward_impl.1} parent=0 // pred_check_branch
    %454 = sbr.rel (0) target = $region45
  $region44: #{_forward_impl.1} parent=0 // pred_region
    _
  $region45: #{_forward_impl.1} parent=0 // pred_fallthru
    _

// kernel: _forward_impl.1
$region0: #{_forward_impl.1}
  #allocation0 [shape = 'u32[]', space=smem, size = 0x4, offset = 0x4, fixed_abs, tag = 'smem constant byte address 0x4 - core index']
  #allocation1 [shape = 'u32[144,128]{1,0:T(1,128)}', space=vmem, size = 0x12000, scoped, tag = 'internal scratch']
  %s0 = inlined_call_operand.vmem [shape: f32[16,16], index: 0, kind: input, shape index: {}, may-alias: {0,9}]
  %s1 = inlined_call_operand.vmem [shape: bf16[16,128], index: 1, kind: input, shape index: {}]
  %s2 = inlined_call_operand.vmem [shape: f32[1,128], index: 2, kind: input, shape index: {}]
  %s3 = inlined_call_operand.vmem [shape: bf16[128,128], index: 3, kind: input, shape index: {}]
  %s4 = inlined_call_operand.vmem [shape: f32[1,128], index: 4, kind: input, shape index: {}]
  %s5 = inlined_call_operand.vmem [shape: bf16[128,128], index: 5, kind: input, shape index: {}]
  %s6 = inlined_call_operand.vmem [shape: f32[1,128], index: 6, kind: input, shape index: {}]
  %s7 = inlined_call_operand.vmem [shape: bf16[128,16], index: 7, kind: input, shape index: {}]
  %s8 = inlined_call_operand.vmem [shape: f32[1,16], index: 8, kind: input, shape index: {}]
  %s9 = inlined_call_operand.vmem [shape: f32[16,16], index: 9, kind: output, shape index: {}, may-alias: {0,9}]
  %s10 = sld [smem:[#allocation0]]
  $region46: #{_forward_impl.1} parent=0
    _
  %s12 = ssub.s32 1, %s10
  %s13 = scalar_select 0, %s12, %s10
  // Predicated region
  $region2: #{_forward_impl.1} parent=0 // pred_check
    _
  $region3: #{_forward_impl.1} parent=0 // pred_check_branch
    %15 = sbr.rel (0) target = $region5
  $region4: #{_forward_impl.1} parent=0 // pred_region
    _
  $region5: #{_forward_impl.1} parent=0 // pred_fallthru
    _
  // Predicated region
  $region6: #{_forward_impl.1} parent=0 // pred_check
    _
  $region7: #{_forward_impl.1} parent=0 // pred_check_branch
    %17 = sbr.rel (0) target = $region9
  $region8: #{_forward_impl.1} parent=0 // pred_region
    _
  $region9: #{_forward_impl.1} parent=0 // pred_fallthru
    _
  // Predicated region
  $region10: #{_forward_impl.1} parent=0 // pred_check
    _
  $region11: #{_forward_impl.1} parent=0 // pred_check_branch
    %19 = sbr.rel (0) target = $region13
  $region12: #{_forward_impl.1} parent=0 // pred_region
    _
  $region13: #{_forward_impl.1} parent=0 // pred_fallthru
    _
  // Predicated region
  $region14: #{_forward_impl.1} parent=0 // pred_check
    _
  $region15: #{_forward_impl.1} parent=0 // pred_check_branch
    %21 = sbr.rel (0) target = $region17
  $region16: #{_forward_impl.1} parent=0 // pred_region
    _
  $region17: #{_forward_impl.1} parent=0 // pred_fallthru
    _
  // Predicated region
  $region18: #{_forward_impl.1} parent=0 // pred_check
    _
  $region19: #{_forward_impl.1} parent=0 // pred_check_branch
    %23 = sbr.rel (0) target = $region21
  $region20: #{_forward_impl.1} parent=0 // pred_region
    _
  $region21: #{_forward_impl.1} parent=0 // pred_fallthru
    _
  // Predicated region
  $region22: #{_forward_impl.1} parent=0 // pred_check
    _
  $region23: #{_forward_impl.1} parent=0 // pred_check_branch
    %25 = sbr.rel (0) target = $region25
  $region24: #{_forward_impl.1} parent=0 // pred_region
    _
  $region25: #{_forward_impl.1} parent=0 // pred_fallthru
    _
  // Predicated region
  $region26: #{_forward_impl.1} parent=0 // pred_check
    _
  $region27: #{_forward_impl.1} parent=0 // pred_check_branch
    %27 = sbr.rel (0) target = $region29
  $region28: #{_forward_impl.1} parent=0 // pred_region
    _
  $region29: #{_forward_impl.1} parent=0 // pred_fallthru
    _
  // Predicated region
  $region30: #{_forward_impl.1} parent=0 // pred_check
    _
  $region31: #{_forward_impl.1} parent=0 // pred_check_branch
    %29 = sbr.rel (0) target = $region33
  $region32: #{_forward_impl.1} parent=0 // pred_region
    _
  $region33: #{_forward_impl.1} parent=0 // pred_fallthru
    _
  // Predicated region
  $region34: #{_forward_impl.1} parent=0 // pred_check
    _
  $region35: #{_forward_impl.1} parent=0 // pred_check_branch
    %31 = sbr.rel (0) target = $region37
  $region36: #{_forward_impl.1} parent=0 // pred_region
    _
  $region37: #{_forward_impl.1} parent=0 // pred_fallthru
    _
  %v33 = vld [vmem:[%s0] sm:$0xff]
  %v34 = vld [vmem:[%s0 + $0x8] sm:$0xff]
  %v35 = vpack.c.bf16 %v34, %v33
  %v36 = vld [vmem:[%s1] sm:$0xf]
  %v37 = vld [vmem:[%s1 + $0x4] sm:$0xf]
  %v38 = vld [vmem:[%s2] sm:$0x1]
  %v40 = vlaneseq
  %v41 = vshrl.u32 %v40, 7
  %v42 = vsub.s32 0, %v41
  %v43 = vrot.slane %v38, %v42
  %v47 = vunpack.c.l.b16 %v36
  %v48 = vunpack.c.l.b16 %v37
  %v49 = vpack.c.b16 %v48, %v47
  %vm51 = vcmask 130048
  %v53 = vsel %vm51, %v35, 0
  %55 = vmatprep.subr.bf16.mxu0 0
  %56 = vmatpush1.bf16.msra.mxu0 %v49
  %57 = vmatprep.subr.bf16.mxu0 0
  %58 = vmatpush1.bf16.msra.mxu0 0
  %59 = vmatprep.subr.bf16.mxu0 0
  %60 = vmatpush1.bf16.msra.mxu0 0
  %61 = vmatprep.subr.bf16.mxu0 0
  %62 = vmatpush1.bf16.msra.mxu0 0
  %63 = vmatprep.subr.bf16.mxu0 0
  %64 = vmatpush1.bf16.msra.mxu0 0
  %65 = vmatprep.subr.bf16.mxu0 0
  %66 = vmatpush1.bf16.msra.mxu0 0
  %67 = vmatprep.subr.bf16.mxu0 0
  %68 = vmatpush1.bf16.msra.mxu0 0
  %69 = vmatprep.subr.bf16.mxu0 0
  %70 = vmatpush1.bf16.msra.mxu0 0
  %71 = vmatprep.subr.bf16.mxu0 0
  %72 = vmatpush1.bf16.msra.mxu0 0
  %73 = vmatprep.subr.bf16.mxu0 0
  %74 = vmatpush1.bf16.msra.mxu0 0
  %75 = vmatprep.subr.bf16.mxu0 0
  %76 = vmatpush1.bf16.msra.mxu0 0
  %77 = vmatprep.subr.bf16.mxu0 0
  %78 = vmatpush1.bf16.msra.mxu0 0
  %79 = vmatprep.subr.bf16.mxu0 0
  %80 = vmatpush1.bf16.msra.mxu0 0
  %81 = vmatprep.subr.bf16.mxu0 0
  %82 = vmatpush1.bf16.msra.mxu0 0
  %83 = vmatprep.subr.bf16.mxu0 0
  %84 = vmatpush1.bf16.msra.mxu0 0
  %85 = vmatprep.subr.bf16.mxu0 0
  %86 = vmatpush1.bf16.msra.mxu0 0
  %87 = vmatprep.mubr.bf16.mxu0 0
  %88 = vmatmul.mubr.bf16.gmra.mrb[0].mxu0 %v53
  %v89 = vpop.f32.mrb[0].mxu0
  %v90 = vadd.f32 %v43, %v89
  %v91 = vpop.f32.mrb[0].mxu0
  %v92 = vpop.f32.mrb[0].mxu0
  %v93 = vadd.f32 %v43, %v92
  %v94 = vpop.f32.mrb[0].mxu0
  %95 = vdwg.mxu0
  %v96 = vmul.f32 %v90, 0.01
  %v97 = vmul.f32 %v93, 0.01
  %v98 = vmax.f32 %v90, %v96
  %v99 = vmax.f32 %v93, %v97
  %v100 = vld [vmem:[%s3] sm:$0xf]
  %v101 = vld [vmem:[%s3 + $0x4] sm:$0xf]
  %v102 = vld [vmem:[%s3 + $0x8] sm:$0xf]
  %v103 = vld [vmem:[%s3 + $0xc] sm:$0xf]
  %v104 = vld [vmem:[%s3 + $0x10] sm:$0xf]
  %v105 = vld [vmem:[%s3 + $0x14] sm:$0xf]
  %v106 = vld [vmem:[%s3 + $0x18] sm:$0xf]
  %v107 = vld [vmem:[%s3 + $0x1c] sm:$0xf]
  %v108 = vld [vmem:[%s3 + $0x20] sm:$0xf]
  %v109 = vld [vmem:[%s3 + $0x24] sm:$0xf]
  %v110 = vld [vmem:[%s3 + $0x28] sm:$0xf]
  %v111 = vld [vmem:[%s3 + $0x2c] sm:$0xf]
  %v112 = vld [vmem:[%s3 + $0x30] sm:$0xf]
  %v113 = vld [vmem:[%s3 + $0x34] sm:$0xf]
  %v114 = vld [vmem:[%s3 + $0x38] sm:$0xf]
  %v115 = vld [vmem:[%s3 + $0x3c] sm:$0xf]
  %v116 = vld [vmem:[%s4] sm:$0x1]
  %v117 = vpack.c.bf16 %v99, %v98
  %v119 = vlaneseq
  %v120 = vshrl.u32 %v119, 7
  %v121 = vsub.s32 0, %v120
  %v122 = vrot.slane %v116, %v121
  %v140 = vunpack.c.l.b16 %v100
  %v141 = vunpack.c.l.b16 %v101
  %v142 = vunpack.c.l.b16 %v102
  %v143 = vunpack.c.l.b16 %v103
  %v144 = vunpack.c.l.b16 %v104
  %v145 = vunpack.c.l.b16 %v105
  %v146 = vunpack.c.l.b16 %v106
  %v147 = vunpack.c.l.b16 %v107
  %v148 = vunpack.c.l.b16 %v108
  %v149 = vunpack.c.l.b16 %v109
  %v150 = vunpack.c.l.b16 %v110
  %v151 = vunpack.c.l.b16 %v111
  %v152 = vunpack.c.l.b16 %v112
  %v153 = vunpack.c.l.b16 %v113
  %v154 = vunpack.c.l.b16 %v114
  %v155 = vunpack.c.l.b16 %v115
  %v156 = vpack.c.b16 %v141, %v140
  %v157 = vpack.c.b16 %v143, %v142
  %v158 = vpack.c.b16 %v145, %v144
  %v159 = vpack.c.b16 %v147, %v146
  %v160 = vpack.c.b16 %v149, %v148
  %v161 = vpack.c.b16 %v151, %v150
  %v162 = vpack.c.b16 %v153, %v152
  %v163 = vpack.c.b16 %v155, %v154
  %172 = vmatprep.subr.bf16.mxu0 0
  %173 = vmatpush1.bf16.msra.mxu0 %v156
  %174 = vmatprep.subr.bf16.mxu0 0
  %175 = vmatpush1.bf16.msra.mxu0 %v157
  %176 = vmatprep.subr.bf16.mxu0 0
  %177 = vmatpush1.bf16.msra.mxu0 %v158
  %178 = vmatprep.subr.bf16.mxu0 0
  %179 = vmatpush1.bf16.msra.mxu0 %v159
  %180 = vmatprep.subr.bf16.mxu0 0
  %181 = vmatpush1.bf16.msra.mxu0 %v160
  %182 = vmatprep.subr.bf16.mxu0 0
  %183 = vmatpush1.bf16.msra.mxu0 %v161
  %184 = vmatprep.subr.bf16.mxu0 0
  %185 = vmatpush1.bf16.msra.mxu0 %v162
  %186 = vmatprep.subr.bf16.mxu0 0
  %187 = vmatpush1.bf16.msra.mxu0 %v163
  %188 = vmatprep.subr.bf16.mxu0 0
  %189 = vmatpush1.bf16.msra.mxu0 0
  %190 = vmatprep.subr.bf16.mxu0 0
  %191 = vmatpush1.bf16.msra.mxu0 0
  %192 = vmatprep.subr.bf16.mxu0 0
  %193 = vmatpush1.bf16.msra.mxu0 0
  %194 = vmatprep.subr.bf16.mxu0 0
  %195 = vmatpush1.bf16.msra.mxu0 0
  %196 = vmatprep.subr.bf16.mxu0 0
  %197 = vmatpush1.bf16.msra.mxu0 0
  %198 = vmatprep.subr.bf16.mxu0 0
  %199 = vmatpush1.bf16.msra.mxu0 0
  %200 = vmatprep.subr.bf16.mxu0 0
  %201 = vmatpush1.bf16.msra.mxu0 0
  %202 = vmatprep.subr.bf16.mxu0 0
  %203 = vmatpush1.bf16.msra.mxu0 0
  %204 = vmatprep.mubr.bf16.mxu0 0
  %205 = vmatmul.mubr.bf16.gmra.mrb[0].mxu0 %v117
  %v206 = vpop.f32.mrb[0].mxu0
  %v207 = vadd.f32 %v122, %v206
  %v208 = vpop.f32.mrb[0].mxu0
  %v209 = vpop.f32.mrb[0].mxu0
  %v210 = vadd.f32 %v122, %v209
  %v211 = vpop.f32.mrb[0].mxu0
  %212 = vdwg.mxu0
  %v213 = vmul.f32 %v207, 0.01
  %v214 = vmul.f32 %v210, 0.01
  %v215 = vmax.f32 %v207, %v213
  %v216 = vmax.f32 %v210, %v214
  %v217 = vld [vmem:[%s5] sm:$0xf]
  %v218 = vld [vmem:[%s5 + $0x4] sm:$0xf]
  %v219 = vld [vmem:[%s5 + $0x8] sm:$0xf]
  %v220 = vld [vmem:[%s5 + $0xc] sm:$0xf]
  %v221 = vld [vmem:[%s5 + $0x10] sm:$0xf]
  %v222 = vld [vmem:[%s5 + $0x14] sm:$0xf]
  %v223 = vld [vmem:[%s5 + $0x18] sm:$0xf]
  %v224 = vld [vmem:[%s5 + $0x1c] sm:$0xf]
  %v225 = vld [vmem:[%s5 + $0x20] sm:$0xf]
  %v226 = vld [vmem:[%s5 + $0x24] sm:$0xf]
  %v227 = vld [vmem:[%s5 + $0x28] sm:$0xf]
  %v228 = vld [vmem:[%s5 + $0x2c] sm:$0xf]
  %v229 = vld [vmem:[%s5 + $0x30] sm:$0xf]
  %v230 = vld [vmem:[%s5 + $0x34] sm:$0xf]
  %v231 = vld [vmem:[%s5 + $0x38] sm:$0xf]
  %v232 = vld [vmem:[%s5 + $0x3c] sm:$0xf]
  %v233 = vld [vmem:[%s6] sm:$0x1]
  %v234 = vpack.c.bf16 %v216, %v215
  %v236 = vlaneseq
  %v237 = vshrl.u32 %v236, 7
  %v238 = vsub.s32 0, %v237
  %v239 = vrot.slane %v233, %v238
  %v257 = vunpack.c.l.b16 %v217
  %v258 = vunpack.c.l.b16 %v218
  %v259 = vunpack.c.l.b16 %v219
  %v260 = vunpack.c.l.b16 %v220
  %v261 = vunpack.c.l.b16 %v221
  %v262 = vunpack.c.l.b16 %v222
  %v263 = vunpack.c.l.b16 %v223
  %v264 = vunpack.c.l.b16 %v224
  %v265 = vunpack.c.l.b16 %v225
  %v266 = vunpack.c.l.b16 %v226
  %v267 = vunpack.c.l.b16 %v227
  %v268 = vunpack.c.l.b16 %v228
  %v269 = vunpack.c.l.b16 %v229
  %v270 = vunpack.c.l.b16 %v230
  %v271 = vunpack.c.l.b16 %v231
  %v272 = vunpack.c.l.b16 %v232
  %v273 = vpack.c.b16 %v258, %v257
  %v274 = vpack.c.b16 %v260, %v259
  %v275 = vpack.c.b16 %v262, %v261
  %v276 = vpack.c.b16 %v264, %v263
  %v277 = vpack.c.b16 %v266, %v265
  %v278 = vpack.c.b16 %v268, %v267
  %v279 = vpack.c.b16 %v270, %v269
  %v280 = vpack.c.b16 %v272, %v271
  %289 = vmatprep.subr.bf16.mxu0 0
  %290 = vmatpush1.bf16.msra.mxu0 %v273
  %291 = vmatprep.subr.bf16.mxu0 0
  %292 = vmatpush1.bf16.msra.mxu0 %v274
  %293 = vmatprep.subr.bf16.mxu0 0
  %294 = vmatpush1.bf16.msra.mxu0 %v275
  %295 = vmatprep.subr.bf16.mxu0 0
  %296 = vmatpush1.bf16.msra.mxu0 %v276
  %297 = vmatprep.subr.bf16.mxu0 0
  %298 = vmatpush1.bf16.msra.mxu0 %v277
  %299 = vmatprep.subr.bf16.mxu0 0
  %300 = vmatpush1.bf16.msra.mxu0 %v278
  %301 = vmatprep.subr.bf16.mxu0 0
  %302 = vmatpush1.bf16.msra.mxu0 %v279
  %303 = vmatprep.subr.bf16.mxu0 0
  %304 = vmatpush1.bf16.msra.mxu0 %v280
  %305 = vmatprep.subr.bf16.mxu0 0
  %306 = vmatpush1.bf16.msra.mxu0 0
  %307 = vmatprep.subr.bf16.mxu0 0
  %308 = vmatpush1.bf16.msra.mxu0 0
  %309 = vmatprep.subr.bf16.mxu0 0
  %310 = vmatpush1.bf16.msra.mxu0 0
  %311 = vmatprep.subr.bf16.mxu0 0
  %312 = vmatpush1.bf16.msra.mxu0 0
  %313 = vmatprep.subr.bf16.mxu0 0
  %314 = vmatpush1.bf16.msra.mxu0 0
  %315 = vmatprep.subr.bf16.mxu0 0
  %316 = vmatpush1.bf16.msra.mxu0 0
  %317 = vmatprep.subr.bf16.mxu0 0
  %318 = vmatpush1.bf16.msra.mxu0 0
  %319 = vmatprep.subr.bf16.mxu0 0
  %320 = vmatpush1.bf16.msra.mxu0 0
  %321 = vmatprep.mubr.bf16.mxu0 0
  %322 = vmatmul.mubr.bf16.gmra.mrb[0].mxu0 %v234
  %v323 = vpop.f32.mrb[0].mxu0
  %v324 = vadd.f32 %v239, %v323
  %v325 = vpop.f32.mrb[0].mxu0
  %v326 = vpop.f32.mrb[0].mxu0
  %v327 = vadd.f32 %v239, %v326
  %v328 = vpop.f32.mrb[0].mxu0
  %329 = vdwg.mxu0
  %v330 = vmul.f32 %v324, 0.01
  %v331 = vmul.f32 %v327, 0.01
  %v332 = vmax.f32 %v324, %v330
  %v333 = vmax.f32 %v327, %v331
  %v334 = vpack.c.bf16 %v333, %v332
  %v335 = vld [vmem:[%s7] sm:$0xf]
  %v336 = vld [vmem:[%s7 + $0x4] sm:$0xf]
  %v337 = vld [vmem:[%s7 + $0x8] sm:$0xf]
  %v338 = vld [vmem:[%s7 + $0xc] sm:$0xf]
  %v339 = vld [vmem:[%s7 + $0x10] sm:$0xf]
  %v340 = vld [vmem:[%s7 + $0x14] sm:$0xf]
  %v341 = vld [vmem:[%s7 + $0x18] sm:$0xf]
  %v342 = vld [vmem:[%s7 + $0x1c] sm:$0xf]
  %v343 = vld [vmem:[%s7 + $0x20] sm:$0xf]
  %v344 = vld [vmem:[%s7 + $0x24] sm:$0xf]
  %v345 = vld [vmem:[%s7 + $0x28] sm:$0xf]
  %v346 = vld [vmem:[%s7 + $0x2c] sm:$0xf]
  %v347 = vld [vmem:[%s7 + $0x30] sm:$0xf]
  %v348 = vld [vmem:[%s7 + $0x34] sm:$0xf]
  %v349 = vld [vmem:[%s7 + $0x38] sm:$0xf]
  %v350 = vld [vmem:[%s7 + $0x3c] sm:$0xf]
  %v351 = vld [vmem:[%s8] sm:$0x1]
  %v353 = vlaneseq
  %v354 = vshrl.u32 %v353, 7
  %v355 = vsub.s32 0, %v354
  %v356 = vrot.slane %v351, %v355
  %v374 = vunpack.c.l.b16 %v335
  %v375 = vunpack.c.l.b16 %v336
  %v376 = vunpack.c.l.b16 %v337
  %v377 = vunpack.c.l.b16 %v338
  %v378 = vunpack.c.l.b16 %v339
  %v379 = vunpack.c.l.b16 %v340
  %v380 = vunpack.c.l.b16 %v341
  %v381 = vunpack.c.l.b16 %v342
  %v382 = vunpack.c.l.b16 %v343
  %v383 = vunpack.c.l.b16 %v344
  %v384 = vunpack.c.l.b16 %v345
  %v385 = vunpack.c.l.b16 %v346
  %v386 = vunpack.c.l.b16 %v347
  %v387 = vunpack.c.l.b16 %v348
  %v388 = vunpack.c.l.b16 %v349
  %v389 = vunpack.c.l.b16 %v350
  %v390 = vpack.c.b16 %v375, %v374
  %v391 = vpack.c.b16 %v377, %v376
  %v392 = vpack.c.b16 %v379, %v378
  %v393 = vpack.c.b16 %v381, %v380
  %v394 = vpack.c.b16 %v383, %v382
  %v395 = vpack.c.b16 %v385, %v384
  %v396 = vpack.c.b16 %v387, %v386
  %v397 = vpack.c.b16 %v389, %v388
  %406 = vmatprep.subr.bf16.mxu0 0
  %407 = vmatpush1.bf16.msra.mxu0 %v390
  %408 = vmatprep.subr.bf16.mxu0 0
  %409 = vmatpush1.bf16.msra.mxu0 %v391
  %410 = vmatprep.subr.bf16.mxu0 0
  %411 = vmatpush1.bf16.msra.mxu0 %v392
  %412 = vmatprep.subr.bf16.mxu0 0
  %413 = vmatpush1.bf16.msra.mxu0 %v393
  %414 = vmatprep.subr.bf16.mxu0 0
  %415 = vmatpush1.bf16.msra.mxu0 %v394
  %416 = vmatprep.subr.bf16.mxu0 0
  %417 = vmatpush1.bf16.msra.mxu0 %v395
  %418 = vmatprep.subr.bf16.mxu0 0
  %419 = vmatpush1.bf16.msra.mxu0 %v396
  %420 = vmatprep.subr.bf16.mxu0 0
  %421 = vmatpush1.bf16.msra.mxu0 %v397
  %422 = vmatprep.subr.bf16.mxu0 0
  %423 = vmatpush1.bf16.msra.mxu0 0
  %424 = vmatprep.subr.bf16.mxu0 0
  %425 = vmatpush1.bf16.msra.mxu0 0
  %426 = vmatprep.subr.bf16.mxu0 0
  %427 = vmatpush1.bf16.msra.mxu0 0
  %428 = vmatprep.subr.bf16.mxu0 0
  %429 = vmatpush1.bf16.msra.mxu0 0
  %430 = vmatprep.subr.bf16.mxu0 0
  %431 = vmatpush1.bf16.msra.mxu0 0
  %432 = vmatprep.subr.bf16.mxu0 0
  %433 = vmatpush1.bf16.msra.mxu0 0
  %434 = vmatprep.subr.bf16.mxu0 0
  %435 = vmatpush1.bf16.msra.mxu0 0
  %436 = vmatprep.subr.bf16.mxu0 0
  %437 = vmatpush1.bf16.msra.mxu0 0
  %438 = vmatprep.mubr.bf16.mxu0 0
  %439 = vmatmul.mubr.bf16.gmra.mrb[0].mxu0 %v334
  %v440 = vpop.f32.mrb[0].mxu0
  %v441 = vadd.f32 %v356, %v440
  %v442 = vpop.f32.mrb[0].mxu0
  %v443 = vpop.f32.mrb[0].mxu0
  %v444 = vadd.f32 %v356, %v443
  %v445 = vpop.f32.mrb[0].mxu0
  %446 = vdwg.mxu0
  %v447 = vadd.f32 %v33, %v441
  %v448 = vadd.f32 %v34, %v444
  %449 = vst.msk [vmem:[%s9] sm:$0xff] %vm51, %v447
  %450 = vst.msk [vmem:[%s9 + $0x8] sm:$0xff] %vm51, %v448
  // Predicated region
  $region38: #{_forward_impl.1} parent=0 // pred_check
    _
  $region39: #{_forward_impl.1} parent=0 // pred_check_branch
    %452 = sbr.rel (0) target = $region41
  $region40: #{_forward_impl.1} parent=0 // pred_region
    _
  $region41: #{_forward_impl.1} parent=0 // pred_fallthru
    _
  // Predicated region
  $region42: #{_forward_impl.1} parent=0 // pred_check
    _
  $region43: #{_forward_impl.1} parent=0 // pred_check_branch
    %454 = sbr.rel (0) target = $region45
  $region44: #{_forward_impl.1} parent=0 // pred_region
    _
  $region45: #{_forward_impl.1} parent=0 // pred_fallthru
    _

</llo_original>
